<compile_context>
chip_gen: v6e
topology: v6e:2x2x1
jax: 0.10.0
libtpu: 0.0.40
codegen_flags: <defaults>
</compile_context>

<pallas_src>
import functools

import jax
import jax.numpy as jnp
from jax import lax
from jax.experimental import pallas as pl
from jax.experimental.pallas import tpu as pltpu

EPS = 1e-5


def _shift_flat(t, d):
    """result[..., i] = t[..., i + d] along the flattened HW (lane) axis,
    zero-filled at the ends.  `d` is a static Python int; lowers to lane
    slices + concatenate.  Positions that would wrap across row boundaries
    are masked by the caller, so zero vs circular fill is irrelevant."""
    if d == 0:
        return t
    pad = jnp.zeros(t.shape[:-1] + (abs(d),), t.dtype)
    if d > 0:
        return jnp.concatenate([t[..., d:], pad], axis=-1)
    return jnp.concatenate([pad, t[..., :d]], axis=-1)


def _bn_relu_dwconv_bn_kernel(x_ref, p_ref, o_ref, *, H, W):
    N, C, HW = x_ref.shape
    inv_cnt = 1.0 / (N * HW)

    def chan_stats(t):
        # Per-channel mean / biased variance over (N, HW).
        # Batch axis first (VPU adds), then one lane (XLU) reduction per
        # statistic; var = E[x^2] - mean^2, clamped at 0 before rsqrt.
        tb = jnp.sum(t, axis=0, keepdims=True)           # (1, C, HW)
        tb2 = jnp.sum(t * t, axis=0, keepdims=True)      # (1, C, HW)
        s1 = jnp.sum(tb, axis=-1, keepdims=True)         # (1, C, 1)
        s2 = jnp.sum(tb2, axis=-1, keepdims=True)        # (1, C, 1)
        mean = s1 * inv_cnt
        var = jnp.maximum(s2 * inv_cnt - mean * mean, 0.0)
        return mean, var

    x = x_ref[...]
    p = p_ref[...]                       # (C, 13) packed params, single DMA
    g1, b1 = p[:, 0:1], p[:, 1:2]
    w = p[:, 2:11]                       # (C, 9) depthwise 3x3 taps
    g2, b2 = p[:, 11:12], p[:, 12:13]

    # ---- BatchNorm2d #1 (batch statistics, biased variance) + ReLU ----
    mean1, var1 = chan_stats(x)
    scale1 = g1 * lax.rsqrt(var1 + EPS)
    y = jnp.maximum(x * scale1 + (b1 - mean1 * scale1), 0.0)

    # ---- depthwise 3x3 conv, stride 1, zero-pad 1, no bias ----
    # Separable shifts: horizontal (+-1 lane) once, combine per kernel row,
    # then vertical (+-W lanes) once.  4 shifts + 4 masks total.
    hw_idx = lax.broadcasted_iota(jnp.int32, (1, 1, HW), 2)
    if W & (W - 1) == 0:
        col = hw_idx & (W - 1)
    else:
        col = hw_idx % W
    not_left = col >= 1                  # source column w-1 valid
    not_right = col <= W - 2             # source column w+1 valid
    not_top = hw_idx >= W                # source row h-1 valid
    not_bot = hw_idx < HW - W            # source row h+1 valid

    y_left = jnp.where(not_left, _shift_flat(y, -1), 0.0)    # src (h, w-1)
    y_right = jnp.where(not_right, _shift_flat(y, 1), 0.0)   # src (h, w+1)

    def hrow(dy):                        # horizontal combo for kernel row dy
        return (w[:, 3 * dy + 0:3 * dy + 1] * y_left
                + w[:, 3 * dy + 1:3 * dy + 2] * y
                + w[:, 3 * dy + 2:3 * dy + 3] * y_right)

    h0, h1, h2 = hrow(0), hrow(1), hrow(2)
    acc = (h1
           + jnp.where(not_top, _shift_flat(h0, -W), 0.0)    # source row h-1
           + jnp.where(not_bot, _shift_flat(h2, W), 0.0))    # source row h+1

    # ---- BatchNorm2d #2 (batch statistics, biased variance) ----
    mean2, var2 = chan_stats(acc)
    scale2 = g2 * lax.rsqrt(var2 + EPS)
    o_ref[...] = (acc * scale2 + (b2 - mean2 * scale2)).astype(o_ref.dtype)


@jax.jit
def forward(x_nchw, gamma1, beta1, conv_w, gamma2, beta2):
    """x_nchw: (N, C, H, W); conv_w: (C, 1, 3, 3) depthwise weight."""
    N, C, H, W = x_nchw.shape
    HW = H * W
    x = x_nchw.reshape(N, C, HW).astype(jnp.float32)   # free reshape of NCHW
    params = jnp.concatenate(
        [gamma1.reshape(C, 1), beta1.reshape(C, 1), conv_w.reshape(C, 9),
         gamma2.reshape(C, 1), beta2.reshape(C, 1)],
        axis=1).astype(jnp.float32)                     # (C, 13)

    kernel = functools.partial(_bn_relu_dwconv_bn_kernel, H=H, W=W)
    # NOTE: grid-less, fully VMEM-resident design: N*C*HW*4 bytes plus a few
    # same-sized temporaries must fit the scoped VMEM budget (v7x: 64 MiB
    # physical).  Fine for this module's shapes; add a grid over N / spatial
    # row blocks (with pl.when-based stat accumulation) before scaling up.
    out = pl.pallas_call(
        kernel,
        out_shape=jax.ShapeDtypeStruct((N, C, HW), jnp.float32),
        in_specs=[pl.BlockSpec(memory_space=pltpu.MemorySpace.VMEM)] * 2,
        out_specs=pl.BlockSpec(memory_space=pltpu.MemorySpace.VMEM),
    )(x, params)
    return out.reshape(N, C, H, W)


def reference(x, gamma1, beta1, conv_w, gamma2, beta2):
    # Pure-JAX reference mirroring PyTorch training-mode BN + grouped conv.
    def bn(t, g, b):
        m = jnp.mean(t, axis=(0, 2, 3), keepdims=True)
        v = jnp.mean((t - m) ** 2, axis=(0, 2, 3), keepdims=True)
        return (t - m) / jnp.sqrt(v + EPS) * g.reshape(1, -1, 1, 1) + b.reshape(1, -1, 1, 1)

    y = jnp.maximum(bn(x, gamma1, beta1), 0.0)
    y = lax.conv_general_dilated(
        y, conv_w, window_strides=(1, 1), padding=((1, 1), (1, 1)),
        feature_group_count=x.shape[1],
        dimension_numbers=("NCHW", "OIHW", "NCHW"))
    return bn(y, gamma2, beta2)


if __name__ == "__main__":
    key = jax.random.PRNGKey(0)
    k_x, k_w, k_g1, k_b1, k_g2, k_b2 = jax.random.split(key, 6)

    N, C, H, W = 2, 24, 16, 16          # C=24 is fixed by the module definition
    x = jax.random.normal(k_x, (N, C, H, W), jnp.float32)
    conv_w = jax.random.normal(k_w, (C, 1, 3, 3), jnp.float32) * 0.2
    gamma1 = 1.0 + 0.1 * jax.random.normal(k_g1, (C,), jnp.float32)
    beta1 = 0.1 * jax.random.normal(k_b1, (C,), jnp.float32)
    gamma2 = 1.0 + 0.1 * jax.random.normal(k_g2, (C,), jnp.float32)
    beta2 = 0.1 * jax.random.normal(k_b2, (C,), jnp.float32)

    out = jax.block_until_ready(forward(x, gamma1, beta1, conv_w, gamma2, beta2))

    ref = reference(x, gamma1, beta1, conv_w, gamma2, beta2)
    assert out.shape == (N, C, H, W)
    max_err = float(jnp.max(jnp.abs(out - ref)))
    assert jnp.allclose(out, ref, atol=1e-4, rtol=1e-4), max_err

    print("KERNEL_OK")
</pallas_src>

<mosaic_0001>
module attributes {stable_mosaic.version = 11 : i64} {
  func.func @_bn_relu_dwconv_bn_kernel(%arg0: memref<2x24x256xf32, #tpu.memory_space<vmem>>, %arg1: memref<24x13xf32, #tpu.memory_space<vmem>>, %arg2: memref<2x24x256xf32, #tpu.memory_space<vmem>>) attributes {dimension_semantics = [], scalar_prefetch = 0 : i64, scratch_operands = 0 : i64, tpu.core_type = #tpu.core_type<tc>} {
    %c0 = arith.constant 0 : index
    %c0_0 = arith.constant 0 : index
    %c0_1 = arith.constant 0 : index
    %0 = vector.load %arg0[%c0, %c0_0, %c0_1] : memref<2x24x256xf32, #tpu.memory_space<vmem>>, vector<2x24x256xf32>
    %c0_2 = arith.constant 0 : index
    %c0_3 = arith.constant 0 : index
    %1 = vector.load %arg1[%c0_2, %c0_3] : memref<24x13xf32, #tpu.memory_space<vmem>>, vector<24x13xf32>
    %2 = vector.extract_strided_slice %1 {offsets = [0, 0], sizes = [24, 1], strides = [1, 1]} : vector<24x13xf32> to vector<24x1xf32>
    %3 = vector.extract_strided_slice %1 {offsets = [0, 1], sizes = [24, 1], strides = [1, 1]} : vector<24x13xf32> to vector<24x1xf32>
    %4 = vector.extract_strided_slice %1 {offsets = [0, 2], sizes = [24, 9], strides = [1, 1]} : vector<24x13xf32> to vector<24x9xf32>
    %5 = vector.extract_strided_slice %1 {offsets = [0, 11], sizes = [24, 1], strides = [1, 1]} : vector<24x13xf32> to vector<24x1xf32>
    %6 = vector.extract_strided_slice %1 {offsets = [0, 12], sizes = [24, 1], strides = [1, 1]} : vector<24x13xf32> to vector<24x1xf32>
    %cst = arith.constant dense<0.000000e+00> : vector<24x256xf32>
    %7 = vector.multi_reduction <add>, %0, %cst [0] : vector<2x24x256xf32> to vector<24x256xf32>
    %8 = vector.shape_cast %7 : vector<24x256xf32> to vector<1x24x256xf32>
    %9 = arith.mulf %0, %0 : vector<2x24x256xf32>
    %cst_4 = arith.constant dense<0.000000e+00> : vector<24x256xf32>
    %10 = vector.multi_reduction <add>, %9, %cst_4 [0] : vector<2x24x256xf32> to vector<24x256xf32>
    %11 = vector.shape_cast %10 : vector<24x256xf32> to vector<1x24x256xf32>
    %cst_5 = arith.constant dense<0.000000e+00> : vector<1x24xf32>
    %12 = vector.multi_reduction <add>, %8, %cst_5 [2] : vector<1x24x256xf32> to vector<1x24xf32>
    %13 = vector.shape_cast %12 : vector<1x24xf32> to vector<1x24x1xf32>
    %cst_6 = arith.constant dense<0.000000e+00> : vector<1x24xf32>
    %14 = vector.multi_reduction <add>, %11, %cst_6 [2] : vector<1x24x256xf32> to vector<1x24xf32>
    %15 = vector.shape_cast %14 : vector<1x24xf32> to vector<1x24x1xf32>
    %cst_7 = arith.constant 0.001953125 : f32
    %16 = vector.broadcast %cst_7 : f32 to vector<1x24x1xf32>
    %17 = arith.mulf %13, %16 : vector<1x24x1xf32>
    %cst_8 = arith.constant 0.001953125 : f32
    %18 = vector.broadcast %cst_8 : f32 to vector<1x24x1xf32>
    %19 = arith.mulf %15, %18 : vector<1x24x1xf32>
    %20 = arith.mulf %17, %17 : vector<1x24x1xf32>
    %21 = arith.subf %19, %20 : vector<1x24x1xf32>
    %cst_9 = arith.constant 0.000000e+00 : f32
    %22 = vector.broadcast %cst_9 : f32 to vector<1x24x1xf32>
    %23 = arith.maximumf %21, %22 : vector<1x24x1xf32>
    %cst_10 = arith.constant 9.99999974E-6 : f32
    %24 = vector.broadcast %cst_10 : f32 to vector<1x24x1xf32>
    %25 = arith.addf %23, %24 : vector<1x24x1xf32>
    %26 = math.rsqrt %25 : vector<1x24x1xf32>
    %27 = vector.shape_cast %2 : vector<24x1xf32> to vector<1x24x1xf32>
    %28 = arith.mulf %27, %26 : vector<1x24x1xf32>
    %29 = vector.broadcast %28 : vector<1x24x1xf32> to vector<2x24x256xf32>
    %30 = arith.mulf %0, %29 : vector<2x24x256xf32>
    %31 = arith.mulf %17, %28 : vector<1x24x1xf32>
    %32 = vector.shape_cast %3 : vector<24x1xf32> to vector<1x24x1xf32>
    %33 = arith.subf %32, %31 : vector<1x24x1xf32>
    %34 = vector.broadcast %33 : vector<1x24x1xf32> to vector<2x24x256xf32>
    %35 = arith.addf %30, %34 : vector<2x24x256xf32>
    %cst_11 = arith.constant 0.000000e+00 : f32
    %36 = vector.broadcast %cst_11 : f32 to vector<2x24x256xf32>
    %37 = arith.maximumf %35, %36 : vector<2x24x256xf32>
    %38 = tpu.iota {dimensions = array<i32: 2>} : vector<1x1x256xi32>
    %c15_i32 = arith.constant 15 : i32
    %39 = vector.broadcast %c15_i32 : i32 to vector<1x1x256xi32>
    %40 = arith.andi %38, %39 : vector<1x1x256xi32>
    %c1_i32 = arith.constant 1 : i32
    %41 = vector.broadcast %c1_i32 : i32 to vector<1x1x256xi32>
    %42 = arith.cmpi sge, %40, %41 : vector<1x1x256xi32>
    %c14_i32 = arith.constant 14 : i32
    %43 = vector.broadcast %c14_i32 : i32 to vector<1x1x256xi32>
    %44 = arith.cmpi sle, %40, %43 : vector<1x1x256xi32>
    %c16_i32 = arith.constant 16 : i32
    %45 = vector.broadcast %c16_i32 : i32 to vector<1x1x256xi32>
    %46 = arith.cmpi sge, %38, %45 : vector<1x1x256xi32>
    %c240_i32 = arith.constant 240 : i32
    %47 = vector.broadcast %c240_i32 : i32 to vector<1x1x256xi32>
    %48 = arith.cmpi slt, %38, %47 : vector<1x1x256xi32>
    %cst_12 = arith.constant 0.000000e+00 : f32
    %49 = vector.broadcast %cst_12 : f32 to vector<2x24x1xf32>
    %50 = vector.extract_strided_slice %37 {offsets = [0, 0, 0], sizes = [2, 24, 255], strides = [1, 1, 1]} : vector<2x24x256xf32> to vector<2x24x255xf32>
    %51 = tpu.concatenate %49, %50 in 2 : vector<2x24x1xf32>, vector<2x24x255xf32> -> vector<2x24x256xf32>
    %cst_13 = arith.constant 0.000000e+00 : f32
    %52 = vector.shape_cast %42 : vector<1x1x256xi1> to vector<1x1x256xi1>
    %53 = vector.broadcast %52 : vector<1x1x256xi1> to vector<2x24x256xi1>
    %54 = vector.broadcast %cst_13 : f32 to vector<2x24x256xf32>
    %55 = arith.select %53, %51, %54 : vector<2x24x256xi1>, vector<2x24x256xf32>
    %cst_14 = arith.constant 0.000000e+00 : f32
    %56 = vector.broadcast %cst_14 : f32 to vector<2x24x1xf32>
    %57 = vector.extract_strided_slice %37 {offsets = [0, 0, 1], sizes = [2, 24, 255], strides = [1, 1, 1]} : vector<2x24x256xf32> to vector<2x24x255xf32>
    %58 = tpu.concatenate %57, %56 in 2 : vector<2x24x255xf32>, vector<2x24x1xf32> -> vector<2x24x256xf32>
    %cst_15 = arith.constant 0.000000e+00 : f32
    %59 = vector.shape_cast %44 : vector<1x1x256xi1> to vector<1x1x256xi1>
    %60 = vector.broadcast %59 : vector<1x1x256xi1> to vector<2x24x256xi1>
    %61 = vector.broadcast %cst_15 : f32 to vector<2x24x256xf32>
    %62 = arith.select %60, %58, %61 : vector<2x24x256xi1>, vector<2x24x256xf32>
    %63 = vector.extract_strided_slice %4 {offsets = [0, 0], sizes = [24, 1], strides = [1, 1]} : vector<24x9xf32> to vector<24x1xf32>
    %64 = vector.shape_cast %63 : vector<24x1xf32> to vector<1x24x1xf32>
    %65 = vector.broadcast %64 : vector<1x24x1xf32> to vector<2x24x256xf32>
    %66 = arith.mulf %65, %55 : vector<2x24x256xf32>
    %67 = vector.extract_strided_slice %4 {offsets = [0, 1], sizes = [24, 1], strides = [1, 1]} : vector<24x9xf32> to vector<24x1xf32>
    %68 = vector.shape_cast %67 : vector<24x1xf32> to vector<1x24x1xf32>
    %69 = vector.broadcast %68 : vector<1x24x1xf32> to vector<2x24x256xf32>
    %70 = arith.mulf %69, %37 : vector<2x24x256xf32>
    %71 = arith.addf %66, %70 : vector<2x24x256xf32>
    %72 = vector.extract_strided_slice %4 {offsets = [0, 2], sizes = [24, 1], strides = [1, 1]} : vector<24x9xf32> to vector<24x1xf32>
    %73 = vector.shape_cast %72 : vector<24x1xf32> to vector<1x24x1xf32>
    %74 = vector.broadcast %73 : vector<1x24x1xf32> to vector<2x24x256xf32>
    %75 = arith.mulf %74, %62 : vector<2x24x256xf32>
    %76 = arith.addf %71, %75 : vector<2x24x256xf32>
    %77 = vector.extract_strided_slice %4 {offsets = [0, 3], sizes = [24, 1], strides = [1, 1]} : vector<24x9xf32> to vector<24x1xf32>
    %78 = vector.shape_cast %77 : vector<24x1xf32> to vector<1x24x1xf32>
    %79 = vector.broadcast %78 : vector<1x24x1xf32> to vector<2x24x256xf32>
    %80 = arith.mulf %79, %55 : vector<2x24x256xf32>
    %81 = vector.extract_strided_slice %4 {offsets = [0, 4], sizes = [24, 1], strides = [1, 1]} : vector<24x9xf32> to vector<24x1xf32>
    %82 = vector.shape_cast %81 : vector<24x1xf32> to vector<1x24x1xf32>
    %83 = vector.broadcast %82 : vector<1x24x1xf32> to vector<2x24x256xf32>
    %84 = arith.mulf %83, %37 : vector<2x24x256xf32>
    %85 = arith.addf %80, %84 : vector<2x24x256xf32>
    %86 = vector.extract_strided_slice %4 {offsets = [0, 5], sizes = [24, 1], strides = [1, 1]} : vector<24x9xf32> to vector<24x1xf32>
    %87 = vector.shape_cast %86 : vector<24x1xf32> to vector<1x24x1xf32>
    %88 = vector.broadcast %87 : vector<1x24x1xf32> to vector<2x24x256xf32>
    %89 = arith.mulf %88, %62 : vector<2x24x256xf32>
    %90 = arith.addf %85, %89 : vector<2x24x256xf32>
    %91 = vector.extract_strided_slice %4 {offsets = [0, 6], sizes = [24, 1], strides = [1, 1]} : vector<24x9xf32> to vector<24x1xf32>
    %92 = vector.shape_cast %91 : vector<24x1xf32> to vector<1x24x1xf32>
    %93 = vector.broadcast %92 : vector<1x24x1xf32> to vector<2x24x256xf32>
    %94 = arith.mulf %93, %55 : vector<2x24x256xf32>
    %95 = vector.extract_strided_slice %4 {offsets = [0, 7], sizes = [24, 1], strides = [1, 1]} : vector<24x9xf32> to vector<24x1xf32>
    %96 = vector.shape_cast %95 : vector<24x1xf32> to vector<1x24x1xf32>
    %97 = vector.broadcast %96 : vector<1x24x1xf32> to vector<2x24x256xf32>
    %98 = arith.mulf %97, %37 : vector<2x24x256xf32>
    %99 = arith.addf %94, %98 : vector<2x24x256xf32>
    %100 = vector.extract_strided_slice %4 {offsets = [0, 8], sizes = [24, 1], strides = [1, 1]} : vector<24x9xf32> to vector<24x1xf32>
    %101 = vector.shape_cast %100 : vector<24x1xf32> to vector<1x24x1xf32>
    %102 = vector.broadcast %101 : vector<1x24x1xf32> to vector<2x24x256xf32>
    %103 = arith.mulf %102, %62 : vector<2x24x256xf32>
    %104 = arith.addf %99, %103 : vector<2x24x256xf32>
    %cst_16 = arith.constant 0.000000e+00 : f32
    %105 = vector.broadcast %cst_16 : f32 to vector<2x24x16xf32>
    %106 = vector.extract_strided_slice %76 {offsets = [0, 0, 0], sizes = [2, 24, 240], strides = [1, 1, 1]} : vector<2x24x256xf32> to vector<2x24x240xf32>
    %107 = tpu.concatenate %105, %106 in 2 : vector<2x24x16xf32>, vector<2x24x240xf32> -> vector<2x24x256xf32>
    %cst_17 = arith.constant 0.000000e+00 : f32
    %108 = vector.shape_cast %46 : vector<1x1x256xi1> to vector<1x1x256xi1>
    %109 = vector.broadcast %108 : vector<1x1x256xi1> to vector<2x24x256xi1>
    %110 = vector.broadcast %cst_17 : f32 to vector<2x24x256xf32>
    %111 = arith.select %109, %107, %110 : vector<2x24x256xi1>, vector<2x24x256xf32>
    %112 = arith.addf %90, %111 : vector<2x24x256xf32>
    %cst_18 = arith.constant 0.000000e+00 : f32
    %113 = vector.broadcast %cst_18 : f32 to vector<2x24x16xf32>
    %114 = vector.extract_strided_slice %104 {offsets = [0, 0, 16], sizes = [2, 24, 240], strides = [1, 1, 1]} : vector<2x24x256xf32> to vector<2x24x240xf32>
    %115 = tpu.concatenate %114, %113 in 2 : vector<2x24x240xf32>, vector<2x24x16xf32> -> vector<2x24x256xf32>
    %cst_19 = arith.constant 0.000000e+00 : f32
    %116 = vector.shape_cast %48 : vector<1x1x256xi1> to vector<1x1x256xi1>
    %117 = vector.broadcast %116 : vector<1x1x256xi1> to vector<2x24x256xi1>
    %118 = vector.broadcast %cst_19 : f32 to vector<2x24x256xf32>
    %119 = arith.select %117, %115, %118 : vector<2x24x256xi1>, vector<2x24x256xf32>
    %120 = arith.addf %112, %119 : vector<2x24x256xf32>
    %cst_20 = arith.constant dense<0.000000e+00> : vector<24x256xf32>
    %121 = vector.multi_reduction <add>, %120, %cst_20 [0] : vector<2x24x256xf32> to vector<24x256xf32>
    %122 = vector.shape_cast %121 : vector<24x256xf32> to vector<1x24x256xf32>
    %123 = arith.mulf %120, %120 : vector<2x24x256xf32>
    %cst_21 = arith.constant dense<0.000000e+00> : vector<24x256xf32>
    %124 = vector.multi_reduction <add>, %123, %cst_21 [0] : vector<2x24x256xf32> to vector<24x256xf32>
    %125 = vector.shape_cast %124 : vector<24x256xf32> to vector<1x24x256xf32>
    %cst_22 = arith.constant dense<0.000000e+00> : vector<1x24xf32>
    %126 = vector.multi_reduction <add>, %122, %cst_22 [2] : vector<1x24x256xf32> to vector<1x24xf32>
    %127 = vector.shape_cast %126 : vector<1x24xf32> to vector<1x24x1xf32>
    %cst_23 = arith.constant dense<0.000000e+00> : vector<1x24xf32>
    %128 = vector.multi_reduction <add>, %125, %cst_23 [2] : vector<1x24x256xf32> to vector<1x24xf32>
    %129 = vector.shape_cast %128 : vector<1x24xf32> to vector<1x24x1xf32>
    %cst_24 = arith.constant 0.001953125 : f32
    %130 = vector.broadcast %cst_24 : f32 to vector<1x24x1xf32>
    %131 = arith.mulf %127, %130 : vector<1x24x1xf32>
    %cst_25 = arith.constant 0.001953125 : f32
    %132 = vector.broadcast %cst_25 : f32 to vector<1x24x1xf32>
    %133 = arith.mulf %129, %132 : vector<1x24x1xf32>
    %134 = arith.mulf %131, %131 : vector<1x24x1xf32>
    %135 = arith.subf %133, %134 : vector<1x24x1xf32>
    %cst_26 = arith.constant 0.000000e+00 : f32
    %136 = vector.broadcast %cst_26 : f32 to vector<1x24x1xf32>
    %137 = arith.maximumf %135, %136 : vector<1x24x1xf32>
    %cst_27 = arith.constant 9.99999974E-6 : f32
    %138 = vector.broadcast %cst_27 : f32 to vector<1x24x1xf32>
    %139 = arith.addf %137, %138 : vector<1x24x1xf32>
    %140 = math.rsqrt %139 : vector<1x24x1xf32>
    %141 = vector.shape_cast %5 : vector<24x1xf32> to vector<1x24x1xf32>
    %142 = arith.mulf %141, %140 : vector<1x24x1xf32>
    %143 = vector.broadcast %142 : vector<1x24x1xf32> to vector<2x24x256xf32>
    %144 = arith.mulf %120, %143 : vector<2x24x256xf32>
    %145 = arith.mulf %131, %142 : vector<1x24x1xf32>
    %146 = vector.shape_cast %6 : vector<24x1xf32> to vector<1x24x1xf32>
    %147 = arith.subf %146, %145 : vector<1x24x1xf32>
    %148 = vector.broadcast %147 : vector<1x24x1xf32> to vector<2x24x256xf32>
    %149 = arith.addf %144, %148 : vector<2x24x256xf32>
    %c0_28 = arith.constant 0 : index
    %c0_29 = arith.constant 0 : index
    %c0_30 = arith.constant 0 : index
    %150 = vector.load %arg2[%c0_28, %c0_29, %c0_30] : memref<2x24x256xf32, #tpu.memory_space<vmem>>, vector<2x24x256xf32>
    tpu.vector_store %arg2[%c0_28, %c0_29, %c0_30], %149 {strides = array<i32>} : memref<2x24x256xf32, #tpu.memory_space<vmem>>, vector<2x24x256xf32>,
    return
  }
}

</mosaic_0001>

<llo_original>
// kernel: forward.1
$region0: #{forward.1}
  #allocation0 [shape = 'u32[]', space=smem, size = 0x4, offset = 0x4, fixed_abs, tag = 'smem constant byte address 0x4 - core index']
  #allocation1 [shape = 'u32[144,128]{1,0:T(1,128)}', space=vmem, size = 0x12000, scoped, tag = 'internal scratch']
  %s0 = inlined_call_operand.vmem [shape: f32[2,24,256], index: 0, kind: input, shape index: {}]
  %s1 = inlined_call_operand.vmem [shape: f32[24,13], index: 1, kind: input, shape index: {}]
  %s2 = inlined_call_operand.vmem [shape: f32[2,24,256], index: 2, kind: output, shape index: {}]
  %s3 = sld [smem:[#allocation0]]
  $region18: #{forward.1} parent=0
    _
  %s5 = ssub.s32 1, %s3
  %s6 = scalar_select 0, %s5, %s3
  // Predicated region
  $region2: #{forward.1} parent=0 // pred_check
    _
  $region3: #{forward.1} parent=0 // pred_check_branch
    %8 = sbr.rel (0) target = $region5
  $region4: #{forward.1} parent=0 // pred_region
    _
  $region5: #{forward.1} parent=0 // pred_fallthru
    _
  // Predicated region
  $region6: #{forward.1} parent=0 // pred_check
    _
  $region7: #{forward.1} parent=0 // pred_check_branch
    %10 = sbr.rel (0) target = $region9
  $region8: #{forward.1} parent=0 // pred_region
    _
  $region9: #{forward.1} parent=0 // pred_fallthru
    _
  %v11 = vld [vmem:[%s0] sm:$0xff]
  %v12 = vld [vmem:[%s0 + $0x8] sm:$0xff]
  %v13 = vld [vmem:[%s0 + $0x10] sm:$0xff]
  %v14 = vld [vmem:[%s0 + $0x18] sm:$0xff]
  %v15 = vld [vmem:[%s0 + $0x20] sm:$0xff]
  %v16 = vld [vmem:[%s0 + $0x28] sm:$0xff]
  %v17 = vld [vmem:[%s0 + $0x30] sm:$0xff]
  %v18 = vld [vmem:[%s0 + $0x38] sm:$0xff]
  %v19 = vld [vmem:[%s0 + $0x40] sm:$0xff]
  %v20 = vld [vmem:[%s0 + $0x48] sm:$0xff]
  %v21 = vld [vmem:[%s0 + $0x50] sm:$0xff]
  %v22 = vld [vmem:[%s0 + $0x58] sm:$0xff]
  %v23 = vld [vmem:[%s1] sm:$0xff]
  %v24 = vld [vmem:[%s1 + $0x8] sm:$0xff]
  %v25 = vld [vmem:[%s1 + $0x10] sm:$0xff]
  %v26 = vadd.f32 %v11, %v17
  %v27 = vadd.f32 %v12, %v18
  %v28 = vadd.f32 %v13, %v19
  %v29 = vadd.f32 %v14, %v20
  %v30 = vadd.f32 %v15, %v21
  %v31 = vadd.f32 %v16, %v22
  %v32 = vmul.f32 %v11, %v11
  %v33 = vmul.f32 %v12, %v12
  %v34 = vmul.f32 %v13, %v13
  %v35 = vmul.f32 %v14, %v14
  %v36 = vmul.f32 %v15, %v15
  %v37 = vmul.f32 %v16, %v16
  %v38 = vmul.f32 %v17, %v17
  %v39 = vmul.f32 %v18, %v18
  %v40 = vmul.f32 %v19, %v19
  %v41 = vmul.f32 %v20, %v20
  %v42 = vmul.f32 %v21, %v21
  %v43 = vmul.f32 %v22, %v22
  %v44 = vadd.f32 %v32, %v38
  %v45 = vadd.f32 %v33, %v39
  %v46 = vadd.f32 %v34, %v40
  %v47 = vadd.f32 %v35, %v41
  %v48 = vadd.f32 %v36, %v42
  %v49 = vadd.f32 %v37, %v43
  %v50 = vadd.f32 %v26, %v27
  %51 = vadd.xlane.f32.xlu0 %v50
  %v52 = vpop.xlane.xlu0 %51
  %v53 = vadd.f32 %v28, %v29
  %54 = vadd.xlane.f32.xlu0 %v53
  %v55 = vpop.xlane.xlu0 %54
  %v56 = vadd.f32 %v30, %v31
  %57 = vadd.xlane.f32.xlu0 %v56
  %v58 = vpop.xlane.xlu0 %57
  %v59 = vadd.f32 %v44, %v45
  %60 = vadd.xlane.f32.xlu0 %v59
  %v61 = vpop.xlane.xlu0 %60
  %v62 = vadd.f32 %v46, %v47
  %63 = vadd.xlane.f32.xlu0 %v62
  %v64 = vpop.xlane.xlu0 %63
  %v65 = vadd.f32 %v48, %v49
  %66 = vadd.xlane.f32.xlu0 %v65
  %v67 = vpop.xlane.xlu0 %66
  %v68 = vmul.f32 %v52, 0.001953125
  %v69 = vmul.f32 %v55, 0.001953125
  %v70 = vmul.f32 %v58, 0.001953125
  %v71 = vmul.f32 %v61, 0.001953125
  %v72 = vmul.f32 %v64, 0.001953125
  %v73 = vmul.f32 %v67, 0.001953125
  %v74 = vmul.f32 %v68, %v68
  %v75 = vmul.f32 %v69, %v69
  %v76 = vmul.f32 %v70, %v70
  %v77 = vsub.f32 %v71, %v74
  %v78 = vsub.f32 %v72, %v75
  %v79 = vsub.f32 %v73, %v76
  %v80 = vmax.f32 %v77, 0.0
  %v81 = vmax.f32 %v78, 0.0
  %v82 = vmax.f32 %v79, 0.0
  %v83 = vadd.f32 %v80, 1e-05
  %v84 = vadd.f32 %v81, 1e-05
  %v85 = vadd.f32 %v82, 1e-05
  %v86 = vrsqrt.pop %v83
  %v87 = vrsqrt.pop %v84
  %v88 = vrsqrt.pop %v85
  %v89 = vmul.f32 %v23, %v86
  %v90 = vmul.f32 %v24, %v87
  %v91 = vmul.f32 %v25, %v88
  %93 = vset.pattern.permute.xlu0 0
  %94 = vperm.xlu0 %93, %v89
  %v95 = vpop.permute.xlu0 %94
  %98 = vset.pattern.permute.xlu0 0
  %99 = vperm.xlu0 %98, %v90
  %v100 = vpop.permute.xlu0 %99
  %103 = vset.pattern.permute.xlu0 0
  %104 = vperm.xlu0 %103, %v91
  %v105 = vpop.permute.xlu0 %104
  %v107 = vmul.f32 %v11, %v95
  %v108 = vmul.f32 %v12, %v95
  %v109 = vmul.f32 %v13, %v100
  %v110 = vmul.f32 %v14, %v100
  %v111 = vmul.f32 %v15, %v105
  %v112 = vmul.f32 %v16, %v105
  %v113 = vmul.f32 %v17, %v95
  %v114 = vmul.f32 %v18, %v95
  %v115 = vmul.f32 %v19, %v100
  %v116 = vmul.f32 %v20, %v100
  %v117 = vmul.f32 %v21, %v105
  %v118 = vmul.f32 %v22, %v105
  %v119 = vmul.f32 %v68, %v89
  %v120 = vmul.f32 %v69, %v90
  %v121 = vmul.f32 %v70, %v91
  %125 = vrot.lane.b32.xlu0 %v119, 1
  %v126 = vpop.permute.xlu0 %125
  %127 = vrot.lane.b32.xlu0 %v120, 1
  %v128 = vpop.permute.xlu0 %127
  %129 = vrot.lane.b32.xlu0 %v121, 1
  %v130 = vpop.permute.xlu0 %129
  %v134 = vsub.f32 %v23, %v126
  %v135 = vsub.f32 %v24, %v128
  %v136 = vsub.f32 %v25, %v130
  %138 = vset.pattern.permute.xlu0 1
  %139 = vperm.xlu0 %138, %v134
  %v140 = vpop.permute.xlu0 %139
  %143 = vset.pattern.permute.xlu0 1
  %144 = vperm.xlu0 %143, %v135
  %v145 = vpop.permute.xlu0 %144
  %148 = vset.pattern.permute.xlu0 1
  %149 = vperm.xlu0 %148, %v136
  %v150 = vpop.permute.xlu0 %149
  %v152 = vadd.f32 %v107, %v140
  %v153 = vadd.f32 %v108, %v140
  %v154 = vadd.f32 %v109, %v145
  %v155 = vadd.f32 %v110, %v145
  %v156 = vadd.f32 %v111, %v150
  %v157 = vadd.f32 %v112, %v150
  %v158 = vadd.f32 %v113, %v140
  %v159 = vadd.f32 %v114, %v140
  %v160 = vadd.f32 %v115, %v145
  %v161 = vadd.f32 %v116, %v145
  %v162 = vadd.f32 %v117, %v150
  %v163 = vadd.f32 %v118, %v150
  %v164 = vmax.f32 %v152, 0.0
  %v165 = vmax.f32 %v153, 0.0
  %v166 = vmax.f32 %v154, 0.0
  %v167 = vmax.f32 %v155, 0.0
  %v168 = vmax.f32 %v156, 0.0
  %v169 = vmax.f32 %v157, 0.0
  %v170 = vmax.f32 %v158, 0.0
  %v171 = vmax.f32 %v159, 0.0
  %v172 = vmax.f32 %v160, 0.0
  %v173 = vmax.f32 %v161, 0.0
  %v174 = vmax.f32 %v162, 0.0
  %v175 = vmax.f32 %v163, 0.0
  %v176 = vlaneseq
  %v177 = vand.u32 %v176, 127
  %v178 = vadd.s32 %v177, 128
  %v179 = vand.u32 %v177, 15
  %v180 = vand.u32 %v178, 15
  %vm181 = vcmp.ge.s32.totalorder %v179, 1
  %vm182 = vcmp.ge.s32.totalorder %v180, 1
  %vm183 = vcmp.le.s32.totalorder %v179, 14
  %vm184 = vcmp.le.s32.totalorder %v180, 14
  %vm185 = vcmp.ge.s32.totalorder %v177, 16
  %vm186 = vcmp.ge.s32.totalorder %v178, 16
  %vm187 = vcmp.lt.s32.totalorder %v177, 240
  %vm188 = vcmp.lt.s32.totalorder %v178, 240
  %201 = vrot.lane.b32.xlu0 %v164, 1
  %v202 = vpop.permute.xlu0 %201
  %203 = vrot.lane.b32.xlu0 %v165, 1
  %v204 = vpop.permute.xlu0 %203
  %205 = vrot.lane.b32.xlu0 %v166, 1
  %v206 = vpop.permute.xlu0 %205
  %207 = vrot.lane.b32.xlu0 %v167, 1
  %v208 = vpop.permute.xlu0 %207
  %209 = vrot.lane.b32.xlu0 %v168, 1
  %v210 = vpop.permute.xlu0 %209
  %211 = vrot.lane.b32.xlu0 %v169, 1
  %v212 = vpop.permute.xlu0 %211
  %213 = vrot.lane.b32.xlu0 %v170, 1
  %v214 = vpop.permute.xlu0 %213
  %215 = vrot.lane.b32.xlu0 %v171, 1
  %v216 = vpop.permute.xlu0 %215
  %217 = vrot.lane.b32.xlu0 %v172, 1
  %v218 = vpop.permute.xlu0 %217
  %219 = vrot.lane.b32.xlu0 %v173, 1
  %v220 = vpop.permute.xlu0 %219
  %221 = vrot.lane.b32.xlu0 %v174, 1
  %v222 = vpop.permute.xlu0 %221
  %223 = vrot.lane.b32.xlu0 %v175, 1
  %v224 = vpop.permute.xlu0 %223
  %vm225 = vcmask 7168
  %v226 = vsel %vm225, %v202, %v204
  %v227 = vsel %vm225, %v206, %v208
  %v228 = vsel %vm225, %v210, %v212
  %v229 = vsel %vm225, %v214, %v216
  %v230 = vsel %vm225, %v218, %v220
  %v231 = vsel %vm225, %v222, %v224
  %v244 = vsel %vm225, 0.0, %v202
  %v245 = vsel %vm225, 0.0, %v206
  %v246 = vsel %vm225, 0.0, %v210
  %v247 = vsel %vm225, 0.0, %v214
  %v248 = vsel %vm225, 0.0, %v218
  %v249 = vsel %vm225, 0.0, %v222
  %v250 = vsel %vm181, 1, 0
  %v251 = vsel %vm182, 1, 0
  %vm252 = vcmp.eq.s32.totalorder %v250, 1
  %vm253 = vcmp.eq.s32.totalorder %v251, 1
  %v254 = vsel %vm252, %v244, 0.0
  %v255 = vsel %vm253, %v226, 0.0
  %v256 = vsel %vm252, %v245, 0.0
  %v257 = vsel %vm253, %v227, 0.0
  %v258 = vsel %vm252, %v246, 0.0
  %v259 = vsel %vm253, %v228, 0.0
  %v260 = vsel %vm252, %v247, 0.0
  %v261 = vsel %vm253, %v229, 0.0
  %v262 = vsel %vm252, %v248, 0.0
  %v263 = vsel %vm253, %v230, 0.0
  %v264 = vsel %vm252, %v249, 0.0
  %v265 = vsel %vm253, %v231, 0.0
  %266 = vrot.lane.b32.xlu0 %v164, 127
  %v267 = vpop.permute.xlu0 %266
  %268 = vrot.lane.b32.xlu0 %v165, 127
  %v269 = vpop.permute.xlu0 %268
  %270 = vrot.lane.b32.xlu0 %v166, 127
  %v271 = vpop.permute.xlu0 %270
  %272 = vrot.lane.b32.xlu0 %v167, 127
  %v273 = vpop.permute.xlu0 %272
  %274 = vrot.lane.b32.xlu0 %v168, 127
  %v275 = vpop.permute.xlu0 %274
  %276 = vrot.lane.b32.xlu0 %v169, 127
  %v277 = vpop.permute.xlu0 %276
  %278 = vrot.lane.b32.xlu0 %v170, 127
  %v279 = vpop.permute.xlu0 %278
  %280 = vrot.lane.b32.xlu0 %v171, 127
  %v281 = vpop.permute.xlu0 %280
  %282 = vrot.lane.b32.xlu0 %v172, 127
  %v283 = vpop.permute.xlu0 %282
  %284 = vrot.lane.b32.xlu0 %v173, 127
  %v285 = vpop.permute.xlu0 %284
  %286 = vrot.lane.b32.xlu0 %v174, 127
  %v287 = vpop.permute.xlu0 %286
  %288 = vrot.lane.b32.xlu0 %v175, 127
  %v289 = vpop.permute.xlu0 %288
  %vm290 = vcmask 1039360
  %v291 = vsel %vm290, %v267, %v269
  %v292 = vsel %vm290, %v271, %v273
  %v293 = vsel %vm290, %v275, %v277
  %v294 = vsel %vm290, %v279, %v281
  %v295 = vsel %vm290, %v283, %v285
  %v296 = vsel %vm290, %v287, %v289
  %v309 = vsel %vm290, %v269, 0.0
  %v310 = vsel %vm290, %v273, 0.0
  %v311 = vsel %vm290, %v277, 0.0
  %v312 = vsel %vm290, %v281, 0.0
  %v313 = vsel %vm290, %v285, 0.0
  %v314 = vsel %vm290, %v289, 0.0
  %v315 = vsel %vm183, 1, 0
  %v316 = vsel %vm184, 1, 0
  %vm317 = vcmp.eq.s32.totalorder %v315, 1
  %vm318 = vcmp.eq.s32.totalorder %v316, 1
  %v319 = vsel %vm317, %v291, 0.0
  %v320 = vsel %vm318, %v309, 0.0
  %v321 = vsel %vm317, %v292, 0.0
  %v322 = vsel %vm318, %v310, 0.0
  %v323 = vsel %vm317, %v293, 0.0
  %v324 = vsel %vm318, %v311, 0.0
  %v325 = vsel %vm317, %v294, 0.0
  %v326 = vsel %vm318, %v312, 0.0
  %v327 = vsel %vm317, %v295, 0.0
  %v328 = vsel %vm318, %v313, 0.0
  %v329 = vsel %vm317, %v296, 0.0
  %v330 = vsel %vm318, %v314, 0.0
  %332 = vset.pattern.permute.xlu0 2
  %333 = vperm.xlu0 %332, %v23
  %v334 = vpop.permute.xlu0 %333
  %337 = vset.pattern.permute.xlu0 2
  %338 = vperm.xlu0 %337, %v24
  %v339 = vpop.permute.xlu0 %338
  %342 = vset.pattern.permute.xlu0 2
  %343 = vperm.xlu0 %342, %v25
  %v344 = vpop.permute.xlu0 %343
  %v346 = vmul.f32 %v334, %v254
  %v347 = vmul.f32 %v334, %v255
  %v348 = vmul.f32 %v339, %v256
  %v349 = vmul.f32 %v339, %v257
  %v350 = vmul.f32 %v344, %v258
  %v351 = vmul.f32 %v344, %v259
  %v352 = vmul.f32 %v334, %v260
  %v353 = vmul.f32 %v334, %v261
  %v354 = vmul.f32 %v339, %v262
  %v355 = vmul.f32 %v339, %v263
  %v356 = vmul.f32 %v344, %v264
  %v357 = vmul.f32 %v344, %v265
  %358 = vset.pattern.permute.xlu0 3
  %359 = vperm.xlu0 %358, %v23
  %v360 = vpop.permute.xlu0 %359
  %362 = vset.pattern.permute.xlu0 3
  %363 = vperm.xlu0 %362, %v24
  %v364 = vpop.permute.xlu0 %363
  %366 = vset.pattern.permute.xlu0 3
  %367 = vperm.xlu0 %366, %v25
  %v368 = vpop.permute.xlu0 %367
  %v370 = vmul.f32 %v360, %v164
  %v371 = vmul.f32 %v360, %v165
  %v372 = vmul.f32 %v364, %v166
  %v373 = vmul.f32 %v364, %v167
  %v374 = vmul.f32 %v368, %v168
  %v375 = vmul.f32 %v368, %v169
  %v376 = vmul.f32 %v360, %v170
  %v377 = vmul.f32 %v360, %v171
  %v378 = vmul.f32 %v364, %v172
  %v379 = vmul.f32 %v364, %v173
  %v380 = vmul.f32 %v368, %v174
  %v381 = vmul.f32 %v368, %v175
  %v382 = vadd.f32 %v346, %v370
  %v383 = vadd.f32 %v347, %v371
  %v384 = vadd.f32 %v348, %v372
  %v385 = vadd.f32 %v349, %v373
  %v386 = vadd.f32 %v350, %v374
  %v387 = vadd.f32 %v351, %v375
  %v388 = vadd.f32 %v352, %v376
  %v389 = vadd.f32 %v353, %v377
  %v390 = vadd.f32 %v354, %v378
  %v391 = vadd.f32 %v355, %v379
  %v392 = vadd.f32 %v356, %v380
  %v393 = vadd.f32 %v357, %v381
  %394 = vset.pattern.permute.xlu0 4
  %395 = vperm.xlu0 %394, %v23
  %v396 = vpop.permute.xlu0 %395
  %398 = vset.pattern.permute.xlu0 4
  %399 = vperm.xlu0 %398, %v24
  %v400 = vpop.permute.xlu0 %399
  %402 = vset.pattern.permute.xlu0 4
  %403 = vperm.xlu0 %402, %v25
  %v404 = vpop.permute.xlu0 %403
  %v406 = vmul.f32 %v396, %v319
  %v407 = vmul.f32 %v396, %v320
  %v408 = vmul.f32 %v400, %v321
  %v409 = vmul.f32 %v400, %v322
  %v410 = vmul.f32 %v404, %v323
  %v411 = vmul.f32 %v404, %v324
  %v412 = vmul.f32 %v396, %v325
  %v413 = vmul.f32 %v396, %v326
  %v414 = vmul.f32 %v400, %v327
  %v415 = vmul.f32 %v400, %v328
  %v416 = vmul.f32 %v404, %v329
  %v417 = vmul.f32 %v404, %v330
  %v418 = vadd.f32 %v382, %v406
  %v419 = vadd.f32 %v383, %v407
  %v420 = vadd.f32 %v384, %v408
  %v421 = vadd.f32 %v385, %v409
  %v422 = vadd.f32 %v386, %v410
  %v423 = vadd.f32 %v387, %v411
  %v424 = vadd.f32 %v388, %v412
  %v425 = vadd.f32 %v389, %v413
  %v426 = vadd.f32 %v390, %v414
  %v427 = vadd.f32 %v391, %v415
  %v428 = vadd.f32 %v392, %v416
  %v429 = vadd.f32 %v393, %v417
  %430 = vset.pattern.permute.xlu0 5
  %431 = vperm.xlu0 %430, %v23
  %v432 = vpop.permute.xlu0 %431
  %434 = vset.pattern.permute.xlu0 5
  %435 = vperm.xlu0 %434, %v24
  %v436 = vpop.permute.xlu0 %435
  %438 = vset.pattern.permute.xlu0 5
  %439 = vperm.xlu0 %438, %v25
  %v440 = vpop.permute.xlu0 %439
  %v442 = vmul.f32 %v432, %v254
  %v443 = vmul.f32 %v432, %v255
  %v444 = vmul.f32 %v436, %v256
  %v445 = vmul.f32 %v436, %v257
  %v446 = vmul.f32 %v440, %v258
  %v447 = vmul.f32 %v440, %v259
  %v448 = vmul.f32 %v432, %v260
  %v449 = vmul.f32 %v432, %v261
  %v450 = vmul.f32 %v436, %v262
  %v451 = vmul.f32 %v436, %v263
  %v452 = vmul.f32 %v440, %v264
  %v453 = vmul.f32 %v440, %v265
  %454 = vset.pattern.permute.xlu0 6
  %455 = vperm.xlu0 %454, %v23
  %v456 = vpop.permute.xlu0 %455
  %458 = vset.pattern.permute.xlu0 6
  %459 = vperm.xlu0 %458, %v24
  %v460 = vpop.permute.xlu0 %459
  %462 = vset.pattern.permute.xlu0 6
  %463 = vperm.xlu0 %462, %v25
  %v464 = vpop.permute.xlu0 %463
  %v466 = vmul.f32 %v456, %v164
  %v467 = vmul.f32 %v456, %v165
  %v468 = vmul.f32 %v460, %v166
  %v469 = vmul.f32 %v460, %v167
  %v470 = vmul.f32 %v464, %v168
  %v471 = vmul.f32 %v464, %v169
  %v472 = vmul.f32 %v456, %v170
  %v473 = vmul.f32 %v456, %v171
  %v474 = vmul.f32 %v460, %v172
  %v475 = vmul.f32 %v460, %v173
  %v476 = vmul.f32 %v464, %v174
  %v477 = vmul.f32 %v464, %v175
  %v478 = vadd.f32 %v442, %v466
  %v479 = vadd.f32 %v443, %v467
  %v480 = vadd.f32 %v444, %v468
  %v481 = vadd.f32 %v445, %v469
  %v482 = vadd.f32 %v446, %v470
  %v483 = vadd.f32 %v447, %v471
  %v484 = vadd.f32 %v448, %v472
  %v485 = vadd.f32 %v449, %v473
  %v486 = vadd.f32 %v450, %v474
  %v487 = vadd.f32 %v451, %v475
  %v488 = vadd.f32 %v452, %v476
  %v489 = vadd.f32 %v453, %v477
  %490 = vset.pattern.permute.xlu0 7
  %491 = vperm.xlu0 %490, %v23
  %v492 = vpop.permute.xlu0 %491
  %494 = vset.pattern.permute.xlu0 7
  %495 = vperm.xlu0 %494, %v24
  %v496 = vpop.permute.xlu0 %495
  %498 = vset.pattern.permute.xlu0 7
  %499 = vperm.xlu0 %498, %v25
  %v500 = vpop.permute.xlu0 %499
  %v502 = vmul.f32 %v492, %v319
  %v503 = vmul.f32 %v492, %v320
  %v504 = vmul.f32 %v496, %v321
  %v505 = vmul.f32 %v496, %v322
  %v506 = vmul.f32 %v500, %v323
  %v507 = vmul.f32 %v500, %v324
  %v508 = vmul.f32 %v492, %v325
  %v509 = vmul.f32 %v492, %v326
  %v510 = vmul.f32 %v496, %v327
  %v511 = vmul.f32 %v496, %v328
  %v512 = vmul.f32 %v500, %v329
  %v513 = vmul.f32 %v500, %v330
  %v514 = vadd.f32 %v478, %v502
  %v515 = vadd.f32 %v479, %v503
  %v516 = vadd.f32 %v480, %v504
  %v517 = vadd.f32 %v481, %v505
  %v518 = vadd.f32 %v482, %v506
  %v519 = vadd.f32 %v483, %v507
  %v520 = vadd.f32 %v484, %v508
  %v521 = vadd.f32 %v485, %v509
  %v522 = vadd.f32 %v486, %v510
  %v523 = vadd.f32 %v487, %v511
  %v524 = vadd.f32 %v488, %v512
  %v525 = vadd.f32 %v489, %v513
  %526 = vset.pattern.permute.xlu0 8
  %527 = vperm.xlu0 %526, %v23
  %v528 = vpop.permute.xlu0 %527
  %530 = vset.pattern.permute.xlu0 8
  %531 = vperm.xlu0 %530, %v24
  %v532 = vpop.permute.xlu0 %531
  %534 = vset.pattern.permute.xlu0 8
  %535 = vperm.xlu0 %534, %v25
  %v536 = vpop.permute.xlu0 %535
  %v538 = vmul.f32 %v528, %v254
  %v539 = vmul.f32 %v528, %v255
  %v540 = vmul.f32 %v532, %v256
  %v541 = vmul.f32 %v532, %v257
  %v542 = vmul.f32 %v536, %v258
  %v543 = vmul.f32 %v536, %v259
  %v544 = vmul.f32 %v528, %v260
  %v545 = vmul.f32 %v528, %v261
  %v546 = vmul.f32 %v532, %v262
  %v547 = vmul.f32 %v532, %v263
  %v548 = vmul.f32 %v536, %v264
  %v549 = vmul.f32 %v536, %v265
  %550 = vset.pattern.permute.xlu0 9
  %551 = vperm.xlu0 %550, %v23
  %v552 = vpop.permute.xlu0 %551
  %554 = vset.pattern.permute.xlu0 9
  %555 = vperm.xlu0 %554, %v24
  %v556 = vpop.permute.xlu0 %555
  %558 = vset.pattern.permute.xlu0 9
  %559 = vperm.xlu0 %558, %v25
  %v560 = vpop.permute.xlu0 %559
  %v562 = vmul.f32 %v552, %v164
  %v563 = vmul.f32 %v552, %v165
  %v564 = vmul.f32 %v556, %v166
  %v565 = vmul.f32 %v556, %v167
  %v566 = vmul.f32 %v560, %v168
  %v567 = vmul.f32 %v560, %v169
  %v568 = vmul.f32 %v552, %v170
  %v569 = vmul.f32 %v552, %v171
  %v570 = vmul.f32 %v556, %v172
  %v571 = vmul.f32 %v556, %v173
  %v572 = vmul.f32 %v560, %v174
  %v573 = vmul.f32 %v560, %v175
  %v574 = vadd.f32 %v538, %v562
  %v575 = vadd.f32 %v539, %v563
  %v576 = vadd.f32 %v540, %v564
  %v577 = vadd.f32 %v541, %v565
  %v578 = vadd.f32 %v542, %v566
  %v579 = vadd.f32 %v543, %v567
  %v580 = vadd.f32 %v544, %v568
  %v581 = vadd.f32 %v545, %v569
  %v582 = vadd.f32 %v546, %v570
  %v583 = vadd.f32 %v547, %v571
  %v584 = vadd.f32 %v548, %v572
  %v585 = vadd.f32 %v549, %v573
  %586 = vset.pattern.permute.xlu0 10
  %587 = vperm.xlu0 %586, %v23
  %v588 = vpop.permute.xlu0 %587
  %590 = vset.pattern.permute.xlu0 10
  %591 = vperm.xlu0 %590, %v24
  %v592 = vpop.permute.xlu0 %591
  %594 = vset.pattern.permute.xlu0 10
  %595 = vperm.xlu0 %594, %v25
  %v596 = vpop.permute.xlu0 %595
  %v598 = vmul.f32 %v588, %v319
  %v599 = vmul.f32 %v588, %v320
  %v600 = vmul.f32 %v592, %v321
  %v601 = vmul.f32 %v592, %v322
  %v602 = vmul.f32 %v596, %v323
  %v603 = vmul.f32 %v596, %v324
  %v604 = vmul.f32 %v588, %v325
  %v605 = vmul.f32 %v588, %v326
  %v606 = vmul.f32 %v592, %v327
  %v607 = vmul.f32 %v592, %v328
  %v608 = vmul.f32 %v596, %v329
  %v609 = vmul.f32 %v596, %v330
  %v610 = vadd.f32 %v574, %v598
  %v611 = vadd.f32 %v575, %v599
  %v612 = vadd.f32 %v576, %v600
  %v613 = vadd.f32 %v577, %v601
  %v614 = vadd.f32 %v578, %v602
  %v615 = vadd.f32 %v579, %v603
  %v616 = vadd.f32 %v580, %v604
  %v617 = vadd.f32 %v581, %v605
  %v618 = vadd.f32 %v582, %v606
  %v619 = vadd.f32 %v583, %v607
  %v620 = vadd.f32 %v584, %v608
  %v621 = vadd.f32 %v585, %v609
  %634 = vrot.lane.b32.xlu0 %v418, 16
  %v635 = vpop.permute.xlu0 %634
  %636 = vrot.lane.b32.xlu0 %v419, 16
  %v637 = vpop.permute.xlu0 %636
  %638 = vrot.lane.b32.xlu0 %v420, 16
  %v639 = vpop.permute.xlu0 %638
  %640 = vrot.lane.b32.xlu0 %v421, 16
  %v641 = vpop.permute.xlu0 %640
  %642 = vrot.lane.b32.xlu0 %v422, 16
  %v643 = vpop.permute.xlu0 %642
  %644 = vrot.lane.b32.xlu0 %v423, 16
  %v645 = vpop.permute.xlu0 %644
  %646 = vrot.lane.b32.xlu0 %v424, 16
  %v647 = vpop.permute.xlu0 %646
  %648 = vrot.lane.b32.xlu0 %v425, 16
  %v649 = vpop.permute.xlu0 %648
  %650 = vrot.lane.b32.xlu0 %v426, 16
  %v651 = vpop.permute.xlu0 %650
  %652 = vrot.lane.b32.xlu0 %v427, 16
  %v653 = vpop.permute.xlu0 %652
  %654 = vrot.lane.b32.xlu0 %v428, 16
  %v655 = vpop.permute.xlu0 %654
  %656 = vrot.lane.b32.xlu0 %v429, 16
  %v657 = vpop.permute.xlu0 %656
  %vm658 = vcmask 130048
  %v659 = vsel %vm658, %v635, %v637
  %v660 = vsel %vm658, %v639, %v641
  %v661 = vsel %vm658, %v643, %v645
  %v662 = vsel %vm658, %v647, %v649
  %v663 = vsel %vm658, %v651, %v653
  %v664 = vsel %vm658, %v655, %v657
  %v677 = vsel %vm658, 0.0, %v635
  %v678 = vsel %vm658, 0.0, %v639
  %v679 = vsel %vm658, 0.0, %v643
  %v680 = vsel %vm658, 0.0, %v647
  %v681 = vsel %vm658, 0.0, %v651
  %v682 = vsel %vm658, 0.0, %v655
  %v683 = vsel %vm185, 1, 0
  %v684 = vsel %vm186, 1, 0
  %vm685 = vcmp.eq.s32.totalorder %v683, 1
  %vm686 = vcmp.eq.s32.totalorder %v684, 1
  %v687 = vsel %vm685, %v677, 0.0
  %v688 = vsel %vm686, %v659, 0.0
  %v689 = vsel %vm685, %v678, 0.0
  %v690 = vsel %vm686, %v660, 0.0
  %v691 = vsel %vm685, %v679, 0.0
  %v692 = vsel %vm686, %v661, 0.0
  %v693 = vsel %vm685, %v680, 0.0
  %v694 = vsel %vm686, %v662, 0.0
  %v695 = vsel %vm685, %v681, 0.0
  %v696 = vsel %vm686, %v663, 0.0
  %v697 = vsel %vm685, %v682, 0.0
  %v698 = vsel %vm686, %v664, 0.0
  %v699 = vadd.f32 %v514, %v687
  %v700 = vadd.f32 %v515, %v688
  %v701 = vadd.f32 %v516, %v689
  %v702 = vadd.f32 %v517, %v690
  %v703 = vadd.f32 %v518, %v691
  %v704 = vadd.f32 %v519, %v692
  %v705 = vadd.f32 %v520, %v693
  %v706 = vadd.f32 %v521, %v694
  %v707 = vadd.f32 %v522, %v695
  %v708 = vadd.f32 %v523, %v696
  %v709 = vadd.f32 %v524, %v697
  %v710 = vadd.f32 %v525, %v698
  %723 = vrot.lane.b32.xlu0 %v610, 112
  %v724 = vpop.permute.xlu0 %723
  %725 = vrot.lane.b32.xlu0 %v611, 112
  %v726 = vpop.permute.xlu0 %725
  %727 = vrot.lane.b32.xlu0 %v612, 112
  %v728 = vpop.permute.xlu0 %727
  %729 = vrot.lane.b32.xlu0 %v613, 112
  %v730 = vpop.permute.xlu0 %729
  %731 = vrot.lane.b32.xlu0 %v614, 112
  %v732 = vpop.permute.xlu0 %731
  %733 = vrot.lane.b32.xlu0 %v615, 112
  %v734 = vpop.permute.xlu0 %733
  %735 = vrot.lane.b32.xlu0 %v616, 112
  %v736 = vpop.permute.xlu0 %735
  %737 = vrot.lane.b32.xlu0 %v617, 112
  %v738 = vpop.permute.xlu0 %737
  %739 = vrot.lane.b32.xlu0 %v618, 112
  %v740 = vpop.permute.xlu0 %739
  %741 = vrot.lane.b32.xlu0 %v619, 112
  %v742 = vpop.permute.xlu0 %741
  %743 = vrot.lane.b32.xlu0 %v620, 112
  %v744 = vpop.permute.xlu0 %743
  %745 = vrot.lane.b32.xlu0 %v621, 112
  %v746 = vpop.permute.xlu0 %745
  %vm747 = vcmask 916480
  %v748 = vsel %vm747, %v724, %v726
  %v749 = vsel %vm747, %v728, %v730
  %v750 = vsel %vm747, %v732, %v734
  %v751 = vsel %vm747, %v736, %v738
  %v752 = vsel %vm747, %v740, %v742
  %v753 = vsel %vm747, %v744, %v746
  %v766 = vsel %vm747, %v726, 0.0
  %v767 = vsel %vm747, %v730, 0.0
  %v768 = vsel %vm747, %v734, 0.0
  %v769 = vsel %vm747, %v738, 0.0
  %v770 = vsel %vm747, %v742, 0.0
  %v771 = vsel %vm747, %v746, 0.0
  %v772 = vsel %vm187, 1, 0
  %v773 = vsel %vm188, 1, 0
  %vm774 = vcmp.eq.s32.totalorder %v772, 1
  %vm775 = vcmp.eq.s32.totalorder %v773, 1
  %v776 = vsel %vm774, %v748, 0.0
  %v777 = vsel %vm775, %v766, 0.0
  %v778 = vsel %vm774, %v749, 0.0
  %v779 = vsel %vm775, %v767, 0.0
  %v780 = vsel %vm774, %v750, 0.0
  %v781 = vsel %vm775, %v768, 0.0
  %v782 = vsel %vm774, %v751, 0.0
  %v783 = vsel %vm775, %v769, 0.0
  %v784 = vsel %vm774, %v752, 0.0
  %v785 = vsel %vm775, %v770, 0.0
  %v786 = vsel %vm774, %v753, 0.0
  %v787 = vsel %vm775, %v771, 0.0
  %v788 = vadd.f32 %v699, %v776
  %v789 = vadd.f32 %v700, %v777
  %v790 = vadd.f32 %v701, %v778
  %v791 = vadd.f32 %v702, %v779
  %v792 = vadd.f32 %v703, %v780
  %v793 = vadd.f32 %v704, %v781
  %v794 = vadd.f32 %v705, %v782
  %v795 = vadd.f32 %v706, %v783
  %v796 = vadd.f32 %v707, %v784
  %v797 = vadd.f32 %v708, %v785
  %v798 = vadd.f32 %v709, %v786
  %v799 = vadd.f32 %v710, %v787
  %v800 = vadd.f32 %v788, %v794
  %v801 = vadd.f32 %v789, %v795
  %v802 = vadd.f32 %v790, %v796
  %v803 = vadd.f32 %v791, %v797
  %v804 = vadd.f32 %v792, %v798
  %v805 = vadd.f32 %v793, %v799
  %v806 = vmul.f32 %v788, %v788
  %v807 = vmul.f32 %v789, %v789
  %v808 = vmul.f32 %v790, %v790
  %v809 = vmul.f32 %v791, %v791
  %v810 = vmul.f32 %v792, %v792
  %v811 = vmul.f32 %v793, %v793
  %v812 = vmul.f32 %v794, %v794
  %v813 = vmul.f32 %v795, %v795
  %v814 = vmul.f32 %v796, %v796
  %v815 = vmul.f32 %v797, %v797
  %v816 = vmul.f32 %v798, %v798
  %v817 = vmul.f32 %v799, %v799
  %v818 = vadd.f32 %v806, %v812
  %v819 = vadd.f32 %v807, %v813
  %v820 = vadd.f32 %v808, %v814
  %v821 = vadd.f32 %v809, %v815
  %v822 = vadd.f32 %v810, %v816
  %v823 = vadd.f32 %v811, %v817
  %v824 = vadd.f32 %v800, %v801
  %825 = vadd.xlane.f32.xlu0 %v824
  %v826 = vpop.xlane.xlu0 %825
  %v827 = vadd.f32 %v802, %v803
  %828 = vadd.xlane.f32.xlu0 %v827
  %v829 = vpop.xlane.xlu0 %828
  %v830 = vadd.f32 %v804, %v805
  %831 = vadd.xlane.f32.xlu0 %v830
  %v832 = vpop.xlane.xlu0 %831
  %v833 = vadd.f32 %v818, %v819
  %834 = vadd.xlane.f32.xlu0 %v833
  %v835 = vpop.xlane.xlu0 %834
  %v836 = vadd.f32 %v820, %v821
  %837 = vadd.xlane.f32.xlu0 %v836
  %v838 = vpop.xlane.xlu0 %837
  %v839 = vadd.f32 %v822, %v823
  %840 = vadd.xlane.f32.xlu0 %v839
  %v841 = vpop.xlane.xlu0 %840
  %v842 = vmul.f32 %v826, 0.001953125
  %v843 = vmul.f32 %v829, 0.001953125
  %v844 = vmul.f32 %v832, 0.001953125
  %v845 = vmul.f32 %v835, 0.001953125
  %v846 = vmul.f32 %v838, 0.001953125
  %v847 = vmul.f32 %v841, 0.001953125
  %v848 = vmul.f32 %v842, %v842
  %v849 = vmul.f32 %v843, %v843
  %v850 = vmul.f32 %v844, %v844
  %v851 = vsub.f32 %v845, %v848
  %v852 = vsub.f32 %v846, %v849
  %v853 = vsub.f32 %v847, %v850
  %v854 = vmax.f32 %v851, 0.0
  %v855 = vmax.f32 %v852, 0.0
  %v856 = vmax.f32 %v853, 0.0
  %v857 = vadd.f32 %v854, 1e-05
  %v858 = vadd.f32 %v855, 1e-05
  %v859 = vadd.f32 %v856, 1e-05
  %v860 = vrsqrt.pop %v857
  %v861 = vrsqrt.pop %v858
  %v862 = vrsqrt.pop %v859
  %v863 = vmul.f32 %v23, %v860
  %v864 = vmul.f32 %v24, %v861
  %v865 = vmul.f32 %v25, %v862
  %867 = vset.pattern.permute.xlu0 11
  %868 = vperm.xlu0 %867, %v863
  %v869 = vpop.permute.xlu0 %868
  %872 = vset.pattern.permute.xlu0 11
  %873 = vperm.xlu0 %872, %v864
  %v874 = vpop.permute.xlu0 %873
  %877 = vset.pattern.permute.xlu0 11
  %878 = vperm.xlu0 %877, %v865
  %v879 = vpop.permute.xlu0 %878
  %v881 = vmul.f32 %v788, %v869
  %v882 = vmul.f32 %v789, %v869
  %v883 = vmul.f32 %v790, %v874
  %v884 = vmul.f32 %v791, %v874
  %v885 = vmul.f32 %v792, %v879
  %v886 = vmul.f32 %v793, %v879
  %v887 = vmul.f32 %v794, %v869
  %v888 = vmul.f32 %v795, %v869
  %v889 = vmul.f32 %v796, %v874
  %v890 = vmul.f32 %v797, %v874
  %v891 = vmul.f32 %v798, %v879
  %v892 = vmul.f32 %v799, %v879
  %v893 = vmul.f32 %v842, %v863
  %v894 = vmul.f32 %v843, %v864
  %v895 = vmul.f32 %v844, %v865
  %899 = vrot.lane.b32.xlu0 %v893, 1
  %v900 = vpop.permute.xlu0 %899
  %901 = vrot.lane.b32.xlu0 %v894, 1
  %v902 = vpop.permute.xlu0 %901
  %903 = vrot.lane.b32.xlu0 %v895, 1
  %v904 = vpop.permute.xlu0 %903
  %v908 = vsub.f32 %v23, %v900
  %v909 = vsub.f32 %v24, %v902
  %v910 = vsub.f32 %v25, %v904
  %912 = vset.pattern.permute.xlu0 12
  %913 = vperm.xlu0 %912, %v908
  %v914 = vpop.permute.xlu0 %913
  %917 = vset.pattern.permute.xlu0 12
  %918 = vperm.xlu0 %917, %v909
  %v919 = vpop.permute.xlu0 %918
  %922 = vset.pattern.permute.xlu0 12
  %923 = vperm.xlu0 %922, %v910
  %v924 = vpop.permute.xlu0 %923
  %v926 = vadd.f32 %v881, %v914
  %v927 = vadd.f32 %v882, %v914
  %v928 = vadd.f32 %v883, %v919
  %v929 = vadd.f32 %v884, %v919
  %v930 = vadd.f32 %v885, %v924
  %v931 = vadd.f32 %v886, %v924
  %v932 = vadd.f32 %v887, %v914
  %v933 = vadd.f32 %v888, %v914
  %v934 = vadd.f32 %v889, %v919
  %v935 = vadd.f32 %v890, %v919
  %v936 = vadd.f32 %v891, %v924
  %v937 = vadd.f32 %v892, %v924
  %938 = vst [vmem:[%s2] sm:$0xff] %v926
  %939 = vst [vmem:[%s2 + $0x8] sm:$0xff] %v927
  %940 = vst [vmem:[%s2 + $0x10] sm:$0xff] %v928
  %941 = vst [vmem:[%s2 + $0x18] sm:$0xff] %v929
  %942 = vst [vmem:[%s2 + $0x20] sm:$0xff] %v930
  %943 = vst [vmem:[%s2 + $0x28] sm:$0xff] %v931
  %944 = vst [vmem:[%s2 + $0x30] sm:$0xff] %v932
  %945 = vst [vmem:[%s2 + $0x38] sm:$0xff] %v933
  %946 = vst [vmem:[%s2 + $0x40] sm:$0xff] %v934
  %947 = vst [vmem:[%s2 + $0x48] sm:$0xff] %v935
  %948 = vst [vmem:[%s2 + $0x50] sm:$0xff] %v936
  %949 = vst [vmem:[%s2 + $0x58] sm:$0xff] %v937
  // Predicated region
  $region10: #{forward.1} parent=0 // pred_check
    _
  $region11: #{forward.1} parent=0 // pred_check_branch
    %951 = sbr.rel (0) target = $region13
  $region12: #{forward.1} parent=0 // pred_region
    _
  $region13: #{forward.1} parent=0 // pred_fallthru
    _
  // Predicated region
  $region14: #{forward.1} parent=0 // pred_check
    _
  $region15: #{forward.1} parent=0 // pred_check_branch
    %953 = sbr.rel (0) target = $region17
  $region16: #{forward.1} parent=0 // pred_region
    _
  $region17: #{forward.1} parent=0 // pred_fallthru
    _

</llo_original>
